<compile_context>
chip_gen: v7x
topology: tpu7x:2x2x1
jax: 0.10.0
libtpu: 0.0.40
codegen_flags: <defaults>
</compile_context>

<pallas_src>
import functools

import jax
import jax.numpy as jnp
from jax import lax
from jax.experimental import pallas as pl
from jax.experimental.pallas import tpu as pltpu

GAMMA = 2.0   # FocalLoss default; applied as an explicit square below.
_LANE = 128   # TPU lane width.


def _cdiv(a: int, b: int) -> int:
    return (a + b - 1) // b


def _round_up(a: int, b: int) -> int:
    return _cdiv(a, b) * b


def _pick_tile(n: int, c: int, itemsize: int, requested) -> int:
    """Samples per block (lane axis). Must be a multiple of 128 lanes unless
    it spans the whole (small) sample axis."""
    if n <= _LANE:
        return n
    cap = (n // _LANE) * _LANE                      # keep block <= array extent
    if requested is not None:
        tile = _round_up(min(requested, n), _LANE)
    else:
        # ~2 MiB logits block => ~4 MiB double-buffered input stream; leaves
        # plenty of scoped-VMEM headroom for f32 intermediates on v7x while
        # amortizing the ~0.35 us per-grid-step overhead.
        budget = 2 * 1024 * 1024
        tile = max(_LANE, ((budget // max(c * itemsize, 1)) // _LANE) * _LANE)
        # Keep >= ~4 grid steps so the "parallel" axis feeds both v7x TCs.
        tile = min(tile, _round_up(_cdiv(n, 4), _LANE))
    return max(_LANE, min(tile, cap))


def _focal_loss_kernel(x_ref, t_ref, psum_ref, *, n_total: int, tile_n: int):
    # x_ref: (C, T) logits block, samples on lanes (any float dtype).
    # t_ref: (1, T) int32 targets, lane-dense.
    # psum_ref: (8, 128) f32 output block; per-tile partial sum at [0, 0].
    x = x_ref[...].astype(jnp.float32)                       # (C, T)
    t = t_ref[...]                                            # (1, T)
    c, tn = x.shape

    # Per-sample (per-lane) log-softmax pieces. Class reductions run over the
    # sublane axis: per-lane VPU accumulation across C/8 vregs, no cross-lane
    # XLU reduce per sample.
    m = jnp.max(x, axis=0, keepdims=True)                     # (1, T)
    e = jnp.exp(x - m)                                        # (C, T)
    sum_e = jnp.sum(e, axis=0, keepdims=True)                 # (1, T)

    # One-hot gather of the target logit / target exponential (no dynamic
    # gather on TPU). Out-of-range targets => all-false one-hot => ce = lse
    # (documented deviation from PyTorch, which would raise).
    class_ids = lax.broadcasted_iota(jnp.int32, (c, tn), 0)   # (C, T)
    onehot = class_ids == t                                   # (C, T)
    target_logit = jnp.sum(jnp.where(onehot, x, 0.0), axis=0, keepdims=True)
    target_e = jnp.sum(jnp.where(onehot, e, 0.0), axis=0, keepdims=True)

    # ce = logsumexp(x) - x[target]  (clamped >= 0 against rounding)
    # pt = softmax(x)[target] = exp(-ce), recovered from the exponentials
    # already computed -- no second exp on the EUP. Exact division (no
    # approx reciprocal) to preserve the 1e-5 tolerance.
    ce = jnp.maximum(jnp.log(sum_e) + (m - target_logit), 0.0)  # (1, T)
    pt = target_e / sum_e                                        # (1, T)
    w = 1.0 - pt
    focal = w * w * ce                       # gamma == 2.0 -> square, no pow

    # Mask ragged-tail lanes (global sample index >= n_total). Garbage in the
    # tail stays confined to its own lane (all ops above are lane-local), and
    # jnp.where (not valid*focal) keeps NaN/Inf out of the partial sum.
    col0 = pl.program_id(0) * tile_n
    col_ids = col0 + lax.broadcasted_iota(jnp.int32, (1, tn), 1)
    partial = jnp.sum(jnp.where(col_ids < n_total, focal, 0.0))

    # Lane-dense (8, 128) writeback: scalar at element (0, 0), zeros elsewhere.
    flat = (lax.broadcasted_iota(jnp.int32, (8, 128), 0) * 128
            + lax.broadcasted_iota(jnp.int32, (8, 128), 1))
    psum_ref[...] = jnp.where(flat == 0, partial, 0.0)


def focal_loss(inputs: jax.Array, targets: jax.Array, *, tile_n=None) -> jax.Array:
    """inputs: (N, C) float logits, targets: (N,) int class indices -> scalar mean focal loss."""
    n, c = inputs.shape
    itemsize = jnp.dtype(inputs.dtype).itemsize

    # Layout plumbing (not compute): samples on lanes. No pad, no astype --
    # bf16 logits stay bf16 in HBM and are upcast inside the kernel.
    xt = jnp.transpose(inputs)                    # (C, N)
    t = targets.astype(jnp.int32).reshape(1, n)   # (1, N), lane-dense

    tile = _pick_tile(n, c, itemsize, tile_n)
    num_tiles = _cdiv(n, tile)

    # VMEM budget derived from the actual block bytes (double-buffered inputs
    # + output), with headroom for in-kernel f32 intermediates; capped at
    # v7x's 32 MiB scoped limit.
    x_block = c * tile * itemsize
    t_block = tile * 4
    out_block = 8 * 128 * 4
    io_bytes = 2 * (x_block + t_block) + 2 * out_block
    vmem_limit = int(min(32 * 1024 * 1024, max(8 * 1024 * 1024, 4 * io_bytes)))

    kernel = functools.partial(_focal_loss_kernel, n_total=n, tile_n=tile)

    partials = pl.pallas_call(
        kernel,
        out_shape=jax.ShapeDtypeStruct((num_tiles * 8, 128), jnp.float32),
        grid_spec=pltpu.PrefetchScalarGridSpec(
            num_scalar_prefetch=0,
            grid=(num_tiles,),
            in_specs=[
                pl.BlockSpec((c, tile), lambda i: (0, i)),
                pl.BlockSpec((1, tile), lambda i: (0, i)),
            ],
            out_specs=pl.BlockSpec((8, 128), lambda i: (i, 0)),
        ),
        compiler_params=pltpu.CompilerParams(
            dimension_semantics=("parallel",),
            vmem_limit_bytes=vmem_limit,
        ),
    )(xt, t)

    # Finish the mean in the wrapper with the *global* N.
    return jnp.sum(partials) / jnp.float32(n)


def _focal_loss_ref(inputs, targets, gamma=GAMMA):
    # Pure-JAX reference for sanity checking.
    logp = jax.nn.log_softmax(inputs.astype(jnp.float32), axis=-1)
    ce = -jnp.take_along_axis(logp, targets[:, None].astype(jnp.int32), axis=-1)[:, 0]
    pt = jnp.exp(-ce)
    return jnp.mean((1.0 - pt) ** gamma * ce)


if __name__ == "__main__":
    key = jax.random.PRNGKey(0)
    k1, k2, k3, k4 = jax.random.split(key, 4)

    # Small shapes consistent with the module: batch=8 samples, 32 classes.
    N, C = 8, 32
    inputs = jax.random.normal(k1, (N, C), dtype=jnp.float32)
    targets = jax.random.randint(k2, (N,), 0, C, dtype=jnp.int32)

    loss = focal_loss(inputs, targets)
    jax.block_until_ready(loss)
    ref = _focal_loss_ref(inputs, targets)
    assert jnp.allclose(loss, ref, atol=1e-5, rtol=1e-5), (loss, ref)

    # Multi-tile + ragged-tail path (N not a multiple of the tile, no padding).
    N2, C2 = 300, 32
    inputs2 = jax.random.normal(k3, (N2, C2), dtype=jnp.float32)
    targets2 = jax.random.randint(k4, (N2,), 0, C2, dtype=jnp.int32)
    loss2 = focal_loss(inputs2, targets2, tile_n=128)
    jax.block_until_ready(loss2)
    ref2 = _focal_loss_ref(inputs2, targets2)
    assert jnp.allclose(loss2, ref2, atol=1e-5, rtol=1e-5), (loss2, ref2)

    # bf16 logits: DMA'd as bf16 (half the HBM read), upcast inside the kernel.
    inputs3 = inputs2.astype(jnp.bfloat16)
    loss3 = focal_loss(inputs3, targets2)
    jax.block_until_ready(loss3)
    ref3 = _focal_loss_ref(inputs3.astype(jnp.float32), targets2)
    assert jnp.allclose(loss3, ref3, atol=1e-4, rtol=1e-4), (loss3, ref3)

    print("KERNEL_OK")
</pallas_src>

<mosaic_0001>
module attributes {stable_mosaic.version = 11 : i64} {
  func.func @_focal_loss_kernel(%arg0: i32, %arg1: memref<32x8xf32, #tpu.memory_space<vmem>>, %arg2: memref<1x8xi32, #tpu.memory_space<vmem>>, %arg3: memref<8x128xf32, #tpu.memory_space<vmem>>) attributes {dimension_semantics = [#tpu.dimension_semantics<parallel>], iteration_bounds = array<i64: 1>, scalar_prefetch = 0 : i64, scratch_operands = 0 : i64, tpu.core_type = #tpu.core_type<tc>, window_params = [{transform_indices = @transform_0, window_bounds = array<i64: 32, 8>}, {transform_indices = @transform_1, window_bounds = array<i64: 1, 8>}, {transform_indices = @transform_2, window_bounds = array<i64: 8, 128>}]} {
    %c0 = arith.constant 0 : index
    %c0_0 = arith.constant 0 : index
    %0 = vector.load %arg1[%c0, %c0_0] : memref<32x8xf32, #tpu.memory_space<vmem>>, vector<32x8xf32>
    %c0_1 = arith.constant 0 : index
    %c0_2 = arith.constant 0 : index
    %1 = vector.load %arg2[%c0_1, %c0_2] : memref<1x8xi32, #tpu.memory_space<vmem>>, vector<1x8xi32>
    %cst = arith.constant dense<0xFF800000> : vector<8xf32>
    %2 = vector.multi_reduction <maximumf>, %0, %cst [0] : vector<32x8xf32> to vector<8xf32>
    %3 = vector.shape_cast %2 : vector<8xf32> to vector<1x8xf32>
    %4 = vector.broadcast %3 : vector<1x8xf32> to vector<32x8xf32>
    %5 = arith.subf %0, %4 : vector<32x8xf32>
    %6 = math.exp %5 : vector<32x8xf32>
    %cst_3 = arith.constant dense<0.000000e+00> : vector<8xf32>
    %7 = vector.multi_reduction <add>, %6, %cst_3 [0] : vector<32x8xf32> to vector<8xf32>
    %8 = vector.shape_cast %7 : vector<8xf32> to vector<1x8xf32>
    %9 = tpu.iota {dimensions = array<i32: 0>} : vector<32x8xi32>
    %10 = vector.broadcast %1 : vector<1x8xi32> to vector<32x8xi32>
    %11 = arith.cmpi eq, %9, %10 : vector<32x8xi32>
    %cst_4 = arith.constant 0.000000e+00 : f32
    %12 = vector.broadcast %cst_4 : f32 to vector<32x8xf32>
    %13 = arith.select %11, %0, %12 : vector<32x8xi1>, vector<32x8xf32>
    %cst_5 = arith.constant dense<0.000000e+00> : vector<8xf32>
    %14 = vector.multi_reduction <add>, %13, %cst_5 [0] : vector<32x8xf32> to vector<8xf32>
    %15 = vector.shape_cast %14 : vector<8xf32> to vector<1x8xf32>
    %cst_6 = arith.constant 0.000000e+00 : f32
    %16 = vector.broadcast %cst_6 : f32 to vector<32x8xf32>
    %17 = arith.select %11, %6, %16 : vector<32x8xi1>, vector<32x8xf32>
    %cst_7 = arith.constant dense<0.000000e+00> : vector<8xf32>
    %18 = vector.multi_reduction <add>, %17, %cst_7 [0] : vector<32x8xf32> to vector<8xf32>
    %19 = vector.shape_cast %18 : vector<8xf32> to vector<1x8xf32>
    %20 = math.log %8 : vector<1x8xf32>
    %21 = arith.subf %3, %15 : vector<1x8xf32>
    %22 = arith.addf %20, %21 : vector<1x8xf32>
    %cst_8 = arith.constant 0.000000e+00 : f32
    %23 = vector.broadcast %cst_8 : f32 to vector<1x8xf32>
    %24 = arith.maximumf %22, %23 : vector<1x8xf32>
    %25 = arith.divf %19, %8 : vector<1x8xf32>
    %cst_9 = arith.constant 1.000000e+00 : f32
    %26 = vector.broadcast %cst_9 : f32 to vector<1x8xf32>
    %27 = arith.subf %26, %25 : vector<1x8xf32>
    %28 = arith.mulf %27, %27 : vector<1x8xf32>
    %29 = arith.mulf %28, %24 : vector<1x8xf32>
    %c8_i32 = arith.constant 8 : i32
    %30 = arith.muli %arg0, %c8_i32 : i32
    %31 = tpu.iota {dimensions = array<i32: 1>} : vector<1x8xi32>
    %32 = vector.broadcast %30 : i32 to vector<1x8xi32>
    %33 = arith.addi %32, %31 : vector<1x8xi32>
    %c8_i32_10 = arith.constant 8 : i32
    %34 = vector.broadcast %c8_i32_10 : i32 to vector<1x8xi32>
    %35 = arith.cmpi slt, %33, %34 : vector<1x8xi32>
    %cst_11 = arith.constant 0.000000e+00 : f32
    %36 = vector.broadcast %cst_11 : f32 to vector<1x8xf32>
    %37 = arith.select %35, %29, %36 : vector<1x8xi1>, vector<1x8xf32>
    %38 = vector.shape_cast %37 : vector<1x8xf32> to vector<1x1x8xf32>
    %cst_12 = arith.constant dense<0.000000e+00> : vector<1xf32>
    %39 = vector.multi_reduction <add>, %38, %cst_12 [1, 2] : vector<1x1x8xf32> to vector<1xf32>
    %40 = vector.shape_cast %39 : vector<1xf32> to vector<1x1x1xf32>
    %41 = vector.extract %40[0, 0, 0] : f32 from vector<1x1x1xf32>
    %42 = tpu.iota {dimensions = array<i32: 0>} : vector<8x128xi32>
    %c128_i32 = arith.constant 128 : i32
    %43 = vector.broadcast %c128_i32 : i32 to vector<8x128xi32>
    %44 = arith.muli %42, %43 : vector<8x128xi32>
    %45 = tpu.iota {dimensions = array<i32: 1>} : vector<8x128xi32>
    %46 = arith.addi %44, %45 : vector<8x128xi32>
    %c0_i32 = arith.constant 0 : i32
    %47 = vector.broadcast %c0_i32 : i32 to vector<8x128xi32>
    %48 = arith.cmpi eq, %46, %47 : vector<8x128xi32>
    %cst_13 = arith.constant 0.000000e+00 : f32
    %49 = vector.broadcast %41 : f32 to vector<8x128xf32>
    %50 = vector.broadcast %cst_13 : f32 to vector<8x128xf32>
    %51 = arith.select %48, %49, %50 : vector<8x128xi1>, vector<8x128xf32>
    %c0_14 = arith.constant 0 : index
    %c0_15 = arith.constant 0 : index
    %52 = vector.load %arg3[%c0_14, %c0_15] : memref<8x128xf32, #tpu.memory_space<vmem>>, vector<8x128xf32>
    tpu.vector_store %arg3[%c0_14, %c0_15], %51 {strides = array<i32>} : memref<8x128xf32, #tpu.memory_space<vmem>>, vector<8x128xf32>,
    return
  }
  func.func @transform_0(%arg0: i32) -> (i32, i32) {
    %c0_i32 = arith.constant 0 : i32
    %c0_i32_0 = arith.constant 0 : i32
    return %c0_i32, %arg0 : i32, i32
  }
  func.func @transform_1(%arg0: i32) -> (i32, i32) {
    %c0_i32 = arith.constant 0 : i32
    %c0_i32_0 = arith.constant 0 : i32
    return %c0_i32, %arg0 : i32, i32
  }
  func.func @transform_2(%arg0: i32) -> (i32, i32) {
    %c0_i32 = arith.constant 0 : i32
    %c0_i32_0 = arith.constant 0 : i32
    return %arg0, %c0_i32 : i32, i32
  }
}

</mosaic_0001>

<llo_original>
// kernel: tpu_custom_call.1
$region0: #{tpu_custom_call.1}
  #allocation0 [shape = 'u32[]', space=smem, size = 0x4, offset = 0x4, fixed_abs, tag = 'smem constant byte address 0x4 - core index']
  #allocation1 [shape = 'u32[144,128]{1,0:T(1,128)}', space=vmem, size = 0x12000, scoped, tag = 'internal scratch']
  %s0 = inlined_call_operand.vmem [shape: f32[32,8], index: 0, kind: input, shape index: {}]
  %s1 = inlined_call_operand.vmem [shape: s32[1,8], index: 1, kind: input, shape index: {}]
  %s2 = inlined_call_operand.hbm [shape: f32[8,128], index: 2, kind: output, shape index: {}]
  %s3 = sld [smem:[#allocation0]]
  $region18: #{tpu_custom_call.1} parent=0
    _
  %s5 = ssub.s32 1, %s3
  %s6 = scalar_select 0, %s5, %s3
  $region1: #{tpu_custom_call.1} parent=0
    #allocation2 [shape = 'u8[4096]{0}', space=vmem, size = 0x1000, scoped, tag = 'output window, operand 0, single buffered']
    #allocation3 [shape = 's32[1]{0}', space=sflag, size = 0x4, scoped, tag = 'scoped memory for tpu_custom_call.1']
    %7 = vsyncpa [#allocation3], 0
    // Predicated region
    $region2: #{tpu_custom_call.1} parent=1 // pred_check
      _
    $region3: #{tpu_custom_call.1} parent=1 // pred_check_branch
      %9 = sbr.rel (0) target = $region5
    $region4: #{tpu_custom_call.1} parent=1 // pred_region
      _
    $region5: #{tpu_custom_call.1} parent=1 // pred_fallthru
      _
    // Predicated region
    $region6: #{tpu_custom_call.1} parent=1 // pred_check
      _
    $region7: #{tpu_custom_call.1} parent=1 // pred_check_branch
      %11 = sbr.rel (0) target = $region9
    $region8: #{tpu_custom_call.1} parent=1 // pred_region
      _
    $region9: #{tpu_custom_call.1} parent=1 // pred_fallthru
      _
    %v12 = vld [vmem:[%s0] sm:$0xff]
    %v13 = vld [vmem:[%s0 + $0x8] sm:$0xff]
    %v14 = vld [vmem:[%s0 + $0x10] sm:$0xff]
    %v15 = vld [vmem:[%s0 + $0x18] sm:$0xff]
    %v16 = vld [vmem:[%s1] sm:$0x1]
    %vm17 = vcmask 64512
    %v18 = vsel %vm17, %v12, -inf
    %v19 = vsel %vm17, %v13, -inf
    %v20 = vsel %vm17, %v14, -inf
    %v21 = vsel %vm17, %v15, -inf
    %v22 = vmax.f32 %v18, %v19
    %v23 = vmax.f32 %v20, %v21
    %v24 = vmax.f32 %v22, %v23
    %v25 = vrot.slane %v24, 4
    %v26 = vmax.f32 %v24, %v25
    %v27 = vrot.slane %v26, 2
    %v28 = vmax.f32 %v26, %v27
    %v29 = vrot.slane %v28, 1
    %v30 = vmax.f32 %v28, %v29
    %v31 = vsub.f32 %v12, %v30
    %v32 = vsub.f32 %v13, %v30
    %v33 = vsub.f32 %v14, %v30
    %v34 = vsub.f32 %v15, %v30
    %v35 = vmul.f32 %v31, 1.442695
    %v36 = vpow.pop %v35
    %v37 = vmul.f32 %v32, 1.442695
    %v38 = vpow.pop %v37
    %v39 = vmul.f32 %v33, 1.442695
    %v40 = vpow.pop %v39
    %v41 = vmul.f32 %v34, 1.442695
    %v42 = vpow.pop %v41
    %v43 = vsel %vm17, %v36, 0.0
    %v44 = vsel %vm17, %v38, 0.0
    %v45 = vadd.f32 %v43, %v44
    %v46 = vsel %vm17, %v40, 0.0
    %v47 = vadd.f32 %v45, %v46
    %v48 = vsel %vm17, %v42, 0.0
    %v49 = vadd.f32 %v47, %v48
    %v50 = vrot.slane %v49, 4
    %v51 = vadd.f32 %v49, %v50
    %v52 = vrot.slane %v51, 2
    %v53 = vadd.f32 %v51, %v52
    %v54 = vrot.slane %v53, 1
    %v55 = vadd.f32 %v53, %v54
    %v56 = vlaneseq
    %v57 = vshrl.u32 %v56, 7
    %v58 = vadd.s32 %v57, 8
    %v59 = vadd.s32 %v57, 16
    %v60 = vadd.s32 %v57, 24
    %v61 = vlaneseq
    %v62 = vshrl.u32 %v61, 7
    %v63 = vsub.s32 0, %v62
    %v64 = vrot.slane %v16, %v63
    %vm65 = vcmp.eq.s32.totalorder %v57, %v64
    %vm66 = vcmp.eq.s32.totalorder %v58, %v64
    %vm67 = vcmp.eq.s32.totalorder %v59, %v64
    %vm68 = vcmp.eq.s32.totalorder %v60, %v64
    %v69 = vsel %vm65, %v12, 0.0
    %v70 = vsel %vm66, %v13, 0.0
    %v71 = vsel %vm67, %v14, 0.0
    %v72 = vsel %vm68, %v15, 0.0
    %v73 = vsel %vm17, %v69, 0.0
    %v74 = vsel %vm17, %v70, 0.0
    %v75 = vadd.f32 %v73, %v74
    %v76 = vsel %vm17, %v71, 0.0
    %v77 = vadd.f32 %v75, %v76
    %v78 = vsel %vm17, %v72, 0.0
    %v79 = vadd.f32 %v77, %v78
    %v80 = vrot.slane %v79, 4
    %v81 = vadd.f32 %v79, %v80
    %v82 = vrot.slane %v81, 2
    %v83 = vadd.f32 %v81, %v82
    %v84 = vrot.slane %v83, 1
    %v85 = vadd.f32 %v83, %v84
    %v86 = vsel %vm65, %v36, 0.0
    %v87 = vsel %vm66, %v38, 0.0
    %v88 = vsel %vm67, %v40, 0.0
    %v89 = vsel %vm68, %v42, 0.0
    %v90 = vsel %vm17, %v86, 0.0
    %v91 = vsel %vm17, %v87, 0.0
    %v92 = vadd.f32 %v90, %v91
    %v93 = vsel %vm17, %v88, 0.0
    %v94 = vadd.f32 %v92, %v93
    %v95 = vsel %vm17, %v89, 0.0
    %v96 = vadd.f32 %v94, %v95
    %v97 = vrot.slane %v96, 4
    %v98 = vadd.f32 %v96, %v97
    %v99 = vrot.slane %v98, 2
    %v100 = vadd.f32 %v98, %v99
    %v101 = vrot.slane %v100, 1
    %v102 = vadd.f32 %v100, %v101
    %v103 = vlog2.pop %v55
    %v104 = vmul.f32 %v103, 0.6931472
    %v105 = vsub.f32 %v30, %v85
    %v106 = vadd.f32 %v104, %v105
    %v107 = vmax.f32 %v106, 0.0
    %v108 = vrcp.pop %v55
    %v109 = vmul.f32 %v102, %v108
    %v110 = vsub.f32 1.0, %v109
    %v111 = vmul.f32 %v110, %v110
    %v112 = vmul.f32 %v111, %v107
    %s113 = smul.u32 0, 8
    %v114 = vlaneseq
    %v115 = vand.u32 %v114, 127
    %v116 = vstv %s113
    %v117 = vadd.s32 %v116, %v115
    %vm118 = vcmp.lt.s32.totalorder %v117, 8
    %v119 = vsel %vm118, %v112, 0.0
    %vm120 = vcmask 57344
    %v121 = vsel %vm120, %v119, 0.0
    %122 = vadd.xlane.f32.xlu0 %v121
    %v123 = vpop.xlane.xlu0 %122
    %v124 = vrot.slane %v123, 4
    %v125 = vadd.f32 %v123, %v124
    %v126 = vrot.slane %v125, 2
    %v127 = vadd.f32 %v125, %v126
    %v128 = vrot.slane %v127, 1
    %v129 = vadd.f32 %v127, %v128
    %s130 = vtos %v129
    %v131 = vmul.u32 %v57, 128
    %v132 = vadd.s32 %v131, %v115
    %vm133 = vcmp.eq.s32.totalorder %v132, 0
    %v134 = vstv %s130
    %v135 = vsel %vm133, %v134, 0.0
    %136 = vst [vmem:[#allocation2] sm:$0xff] %v135
    // Predicated region
    $region10: #{tpu_custom_call.1} parent=1 // pred_check
      _
    $region11: #{tpu_custom_call.1} parent=1 // pred_check_branch
      %138 = sbr.rel (0) target = $region13
    $region12: #{tpu_custom_call.1} parent=1 // pred_region
      %s140 = ssub.s32 128, 128
      %141 = vsyncadd [#allocation3], %s140
      %s143 = sshll.u32 [#allocation2], 4
      %s144 = int_to_ptr.vmem [resolvable:$true] %s143
      %146 = dma.vmem_to_hbm [thread:$0]  %s144, 128, %s2, [#allocation3]
    $region13: #{tpu_custom_call.1} parent=1 // pred_fallthru
      _
    // Predicated region
    $region14: #{tpu_custom_call.1} parent=1 // pred_check
      _
    $region15: #{tpu_custom_call.1} parent=1 // pred_check_branch
      %148 = sbr.rel (0) target = $region17
    $region16: #{tpu_custom_call.1} parent=1 // pred_region
      %149 = dma.done [#allocation3], 128
    $region17: #{tpu_custom_call.1} parent=1 // pred_fallthru
      _
    %150 = vsyncpa [#allocation3], 1

</llo_original>
